<compile_context>
chip_gen: v5e
topology: v5e:2x2
jax: 0.10.0
libtpu: 0.0.40
codegen_flags: <defaults>
</compile_context>

<pallas_src>
import functools

import jax
import jax.numpy as jnp
from jax.experimental import pallas as pl
from jax.experimental.pallas import tpu as pltpu


def _se_kernel(x_ref, pmat_ref, w1t_ref, b1_ref, w2t_ref, b2_ref, emat_ref, o_ref):
    # x block: (B, C*HW) -- batch on sublanes, flattened channel*spatial on lanes.
    xf = x_ref[...].astype(jnp.float32)                                      # (B, L)

    # Squeeze: per-sample, per-channel mean via a resident pooling matmul.
    pooled = jnp.dot(xf, pmat_ref[...], preferred_element_type=jnp.float32)  # (B, C)

    # Reduce 1x1 conv + bias + ReLU.
    h = jnp.dot(pooled, w1t_ref[...], preferred_element_type=jnp.float32)
    h = jnp.maximum(h + b1_ref[...], 0.0)                                    # (B, rd)

    # Expand 1x1 conv + bias + sigmoid gate.
    g = jnp.dot(h, w2t_ref[...], preferred_element_type=jnp.float32)
    g = jax.nn.sigmoid(g + b2_ref[...])                                      # (B, C)

    # Excite: broadcast each channel gate across its HW lanes via a resident
    # expand matmul (no reshapes / relayouts in the kernel).
    gate = jnp.dot(g, emat_ref[...], preferred_element_type=jnp.float32)     # (B, L)
    o_ref[...] = (xf * gate).astype(o_ref.dtype)


def _choose_batch_block(n, row_bytes, *, target_block_bytes=2 << 20, min_grid=8):
    """Pick a batch block: ~1-4 MiB blocks, >=~min_grid steps, sublane-dense."""
    if n <= 8:
        return int(n)                       # tiny batch: one dense full block
    by_budget = max(1, target_block_bytes // max(1, row_bytes))
    by_grid = -(-n // min_grid)             # ceil(n / min_grid)
    b = min(by_budget, by_grid, n)
    b = max(8, (b // 8) * 8)                # multiple of 8 -> dense sublanes
    return int(min(b, n))


@functools.partial(jax.jit, static_argnames=("C", "HW", "rd", "B"))
def _se_forward(x_nchw, w1, b1, w2, b2, *, C, HW, rd, B):
    N = x_nchw.shape[0]
    L = C * HW
    itemsize = jnp.dtype(x_nchw.dtype).itemsize

    # Flatten to (N, C*HW): free (bitcast) for a contiguous NCHW array.
    x_flat = x_nchw.reshape(N, L)

    # Resident constants / weights (tiny), all f32, pre-transposed so the
    # kernel does plain row-major matmuls with no transposes.
    eye_c = jnp.eye(C, dtype=jnp.float32)
    pool_mat = jnp.repeat(eye_c, HW, axis=0) * (1.0 / HW)   # (L, C): mean per channel
    expand_mat = jnp.repeat(eye_c, HW, axis=1)              # (C, L): gate broadcast
    w1t = w1.astype(jnp.float32).T                          # (C, rd)
    w2t = w2.astype(jnp.float32).T                          # (rd, C)
    b1r = b1.astype(jnp.float32).reshape(1, rd)
    b2r = b2.astype(jnp.float32).reshape(1, C)

    grid_n = int(pl.cdiv(N, B))             # ragged tail handled by Pallas masking

    # Tight VMEM bound: double-buffered in+out blocks (+ possible f32 temp of
    # the block for bf16 inputs) + headroom for the small resident weights and
    # compiler scratch.  Clamped safely below v7x's 64 MiB physical VMEM.
    block_bytes = B * L * itemsize
    vmem_limit = int(min(56 << 20, max(32 << 20, 4 * block_bytes + 2 * B * L * 4 + (8 << 20))))

    # Advisory cost hint so XLA can schedule neighbours around the custom call.
    flops = 2 * N * L * C + 2 * N * C * rd + 2 * N * rd * C + 2 * N * C * L + N * L
    cost = pl.CostEstimate(
        flops=int(flops),
        transcendentals=int(N * C),
        bytes_accessed=int(2 * N * L * itemsize),
    )

    out_flat = pl.pallas_call(
        _se_kernel,
        out_shape=jax.ShapeDtypeStruct((N, L), x_nchw.dtype),
        grid_spec=pltpu.PrefetchScalarGridSpec(
            num_scalar_prefetch=0,
            grid=(grid_n,),
            in_specs=[
                pl.BlockSpec((B, L), lambda i: (i, 0)),     # x tile
                pl.BlockSpec((L, C), lambda i: (0, 0)),     # pooling matrix (resident)
                pl.BlockSpec((C, rd), lambda i: (0, 0)),    # W1^T
                pl.BlockSpec((1, rd), lambda i: (0, 0)),    # b1 row
                pl.BlockSpec((rd, C), lambda i: (0, 0)),    # W2^T
                pl.BlockSpec((1, C), lambda i: (0, 0)),     # b2 row
                pl.BlockSpec((C, L), lambda i: (0, 0)),     # expand matrix (resident)
            ],
            out_specs=pl.BlockSpec((B, L), lambda i: (i, 0)),
        ),
        compiler_params=pltpu.CompilerParams(
            dimension_semantics=("parallel",),
            vmem_limit_bytes=vmem_limit,
        ),
        cost_estimate=cost,
    )(x_flat, pool_mat, w1t, b1r, w2t, b2r, expand_mat)

    H = int(round((HW) ** 0.5)) if False else None  # unused; keep reshape below explicit
    return out_flat.reshape(x_nchw.shape)


def squeeze_excite(x_nchw, w1, b1, w2, b2, *, batch_block=None,
                   target_block_bytes=2 << 20):
    """SE forward.

    x_nchw: (N, C, H, W).
    w1: (rd, C), b1: (rd,) or (rd, 1)   -- conv_reduce 1x1 weight/bias (squeezed)
    w2: (C, rd), b2: (C,) or (C, 1)     -- conv_expand 1x1 weight/bias (squeezed)
    """
    N, C, H, W = x_nchw.shape
    rd = w1.shape[0]
    HW = H * W
    # TODO(synk): for real SE shapes where C*H*W % 128 != 0 (e.g. HW=49/196),
    # pad HW (or C*HW) to a multiple of 128 at the layer boundary to keep the
    # output stores lane-dense instead of masked vst.msk.
    row_bytes = C * HW * jnp.dtype(x_nchw.dtype).itemsize
    if batch_block is None:
        B = _choose_batch_block(N, row_bytes, target_block_bytes=target_block_bytes)
    else:
        B = int(batch_block)
    B = int(min(max(B, 1), N))
    return _se_forward(x_nchw, w1, b1, w2, b2, C=C, HW=HW, rd=rd, B=B)


def _reference(x, w1, b1, w2, b2):
    x_se = jnp.mean(x, axis=(2, 3), keepdims=True)                       # (N,C,1,1)
    x_se = jnp.einsum('rc,nchw->nrhw', w1, x_se) + b1.reshape(1, -1, 1, 1)
    x_se = jnp.maximum(x_se, 0.0)
    x_se = jnp.einsum('cr,nrhw->nchw', w2, x_se) + b2.reshape(1, -1, 1, 1)
    return x * jax.nn.sigmoid(x_se)


if __name__ == "__main__":
    # Module config: in_chs=4, rd_ratio=0.25 -> rd_channels = round(4 * 0.25) = 1
    N, C, H, W = 2, 4, 16, 16
    rd = round(C * 0.25)

    key = jax.random.PRNGKey(0)
    kx, k1, kb1, k2, kb2 = jax.random.split(key, 5)

    x = jax.random.normal(kx, (N, C, H, W), dtype=jnp.float32)
    # conv_reduce: Conv2d(C, rd, 1, bias=True) -> weight (rd, C, 1, 1) squeezed to (rd, C)
    w1 = jax.random.normal(k1, (rd, C), dtype=jnp.float32) * 0.1
    b1 = jax.random.normal(kb1, (rd, 1), dtype=jnp.float32) * 0.1
    # conv_expand: Conv2d(rd, C, 1, bias=True) -> weight (C, rd, 1, 1) squeezed to (C, rd)
    w2 = jax.random.normal(k2, (C, rd), dtype=jnp.float32) * 0.1
    b2 = jax.random.normal(kb2, (C, 1), dtype=jnp.float32) * 0.1

    out = squeeze_excite(x, w1, b1, w2, b2)
    out = jax.block_until_ready(out)

    ref = _reference(x, w1, b1, w2, b2)
    assert out.shape == (N, C, H, W)
    assert jnp.allclose(out, ref, atol=1e-5, rtol=1e-5), float(jnp.max(jnp.abs(out - ref)))

    print("KERNEL_OK")
</pallas_src>

<mosaic_0001>
module attributes {stable_mosaic.version = 11 : i64} {
  func.func @_se_kernel(%arg0: i32, %arg1: memref<2x1024xf32, #tpu.memory_space<vmem>>, %arg2: memref<1024x4xf32, #tpu.memory_space<vmem>>, %arg3: memref<4x1xf32, #tpu.memory_space<vmem>>, %arg4: memref<1x1xf32, #tpu.memory_space<vmem>>, %arg5: memref<1x4xf32, #tpu.memory_space<vmem>>, %arg6: memref<1x4xf32, #tpu.memory_space<vmem>>, %arg7: memref<4x1024xf32, #tpu.memory_space<vmem>>, %arg8: memref<2x1024xf32, #tpu.memory_space<vmem>>) attributes {dimension_semantics = [#tpu.dimension_semantics<parallel>], iteration_bounds = array<i64: 1>, scalar_prefetch = 0 : i64, scratch_operands = 0 : i64, tpu.core_type = #tpu.core_type<tc>, window_params = [{transform_indices = @transform_0, window_bounds = array<i64: 2, 1024>}, {pipeline_mode = #tpu.pipeline_mode<synchronous>, transform_indices = @transform_1, window_bounds = array<i64: 1024, 4>}, {pipeline_mode = #tpu.pipeline_mode<synchronous>, transform_indices = @transform_2, window_bounds = array<i64: 4, 1>}, {pipeline_mode = #tpu.pipeline_mode<synchronous>, transform_indices = @transform_3, window_bounds = array<i64: 1, 1>}, {pipeline_mode = #tpu.pipeline_mode<synchronous>, transform_indices = @transform_4, window_bounds = array<i64: 1, 4>}, {pipeline_mode = #tpu.pipeline_mode<synchronous>, transform_indices = @transform_5, window_bounds = array<i64: 1, 4>}, {pipeline_mode = #tpu.pipeline_mode<synchronous>, transform_indices = @transform_6, window_bounds = array<i64: 4, 1024>}, {transform_indices = @transform_7, window_bounds = array<i64: 2, 1024>}]} {
    %c0 = arith.constant 0 : index
    %c0_0 = arith.constant 0 : index
    %0 = vector.load %arg1[%c0, %c0_0] : memref<2x1024xf32, #tpu.memory_space<vmem>>, vector<2x1024xf32>
    %c0_1 = arith.constant 0 : index
    %c0_2 = arith.constant 0 : index
    %1 = vector.load %arg2[%c0_1, %c0_2] : memref<1024x4xf32, #tpu.memory_space<vmem>>, vector<1024x4xf32>
    %cst = arith.constant dense<0.000000e+00> : vector<2x4xf32>
    %2 = tpu.matmul %0, %1, %cst {dimension_numbers = #tpu.dot_dimension_numbers<[1], [0], [0], [1], [0, 0, 1, 1], [], []>} : vector<2x1024xf32>, vector<1024x4xf32>, vector<2x4xf32> -> vector<2x4xf32>
    %c0_3 = arith.constant 0 : index
    %c0_4 = arith.constant 0 : index
    %3 = vector.load %arg3[%c0_3, %c0_4] : memref<4x1xf32, #tpu.memory_space<vmem>>, vector<4x1xf32>
    %cst_5 = arith.constant dense<0.000000e+00> : vector<2x1xf32>
    %4 = tpu.matmul %2, %3, %cst_5 {dimension_numbers = #tpu.dot_dimension_numbers<[1], [0], [0], [1], [0, 0, 1, 1], [], []>} : vector<2x4xf32>, vector<4x1xf32>, vector<2x1xf32> -> vector<2x1xf32>
    %c0_6 = arith.constant 0 : index
    %c0_7 = arith.constant 0 : index
    %5 = vector.load %arg4[%c0_6, %c0_7] : memref<1x1xf32, #tpu.memory_space<vmem>>, vector<1x1xf32>
    %6 = vector.broadcast %5 : vector<1x1xf32> to vector<2x1xf32>
    %7 = arith.addf %4, %6 : vector<2x1xf32>
    %cst_8 = arith.constant 0.000000e+00 : f32
    %8 = vector.broadcast %cst_8 : f32 to vector<2x1xf32>
    %9 = arith.maximumf %7, %8 : vector<2x1xf32>
    %c0_9 = arith.constant 0 : index
    %c0_10 = arith.constant 0 : index
    %10 = vector.load %arg5[%c0_9, %c0_10] : memref<1x4xf32, #tpu.memory_space<vmem>>, vector<1x4xf32>
    %cst_11 = arith.constant dense<0.000000e+00> : vector<2x4xf32>
    %11 = tpu.matmul %9, %10, %cst_11 {dimension_numbers = #tpu.dot_dimension_numbers<[1], [0], [0], [1], [0, 0, 1, 1], [], []>} : vector<2x1xf32>, vector<1x4xf32>, vector<2x4xf32> -> vector<2x4xf32>
    %c0_12 = arith.constant 0 : index
    %c0_13 = arith.constant 0 : index
    %12 = vector.load %arg6[%c0_12, %c0_13] : memref<1x4xf32, #tpu.memory_space<vmem>>, vector<1x4xf32>
    %13 = vector.broadcast %12 : vector<1x4xf32> to vector<2x4xf32>
    %14 = arith.addf %11, %13 : vector<2x4xf32>
    %15 = arith.negf %14 : vector<2x4xf32>
    %16 = math.exp %15 : vector<2x4xf32>
    %cst_14 = arith.constant 1.000000e+00 : f32
    %17 = vector.broadcast %cst_14 : f32 to vector<2x4xf32>
    %18 = arith.addf %17, %16 : vector<2x4xf32>
    %19 = arith.divf %17, %18 : vector<2x4xf32>
    %c0_15 = arith.constant 0 : index
    %c0_16 = arith.constant 0 : index
    %20 = vector.load %arg7[%c0_15, %c0_16] : memref<4x1024xf32, #tpu.memory_space<vmem>>, vector<4x1024xf32>
    %cst_17 = arith.constant dense<0.000000e+00> : vector<2x1024xf32>
    %21 = tpu.matmul %19, %20, %cst_17 {dimension_numbers = #tpu.dot_dimension_numbers<[1], [0], [0], [1], [0, 0, 1, 1], [], []>} : vector<2x4xf32>, vector<4x1024xf32>, vector<2x1024xf32> -> vector<2x1024xf32>
    %22 = arith.mulf %0, %21 : vector<2x1024xf32>
    %c0_18 = arith.constant 0 : index
    %c0_19 = arith.constant 0 : index
    %23 = vector.load %arg8[%c0_18, %c0_19] : memref<2x1024xf32, #tpu.memory_space<vmem>>, vector<2x1024xf32>
    tpu.vector_store %arg8[%c0_18, %c0_19], %22 {strides = array<i32>} : memref<2x1024xf32, #tpu.memory_space<vmem>>, vector<2x1024xf32>,
    return
  }
  func.func @transform_0(%arg0: i32) -> (i32, i32) {
    %c0_i32 = arith.constant 0 : i32
    %c0_i32_0 = arith.constant 0 : i32
    return %arg0, %c0_i32 : i32, i32
  }
  func.func @transform_1(%arg0: i32) -> (i32, i32) {
    %c0_i32 = arith.constant 0 : i32
    %c0_i32_0 = arith.constant 0 : i32
    %c0_i32_1 = arith.constant 0 : i32
    return %c0_i32, %c0_i32_0 : i32, i32
  }
  func.func @transform_2(%arg0: i32) -> (i32, i32) {
    %c0_i32 = arith.constant 0 : i32
    %c0_i32_0 = arith.constant 0 : i32
    %c0_i32_1 = arith.constant 0 : i32
    return %c0_i32, %c0_i32_0 : i32, i32
  }
  func.func @transform_3(%arg0: i32) -> (i32, i32) {
    %c0_i32 = arith.constant 0 : i32
    %c0_i32_0 = arith.constant 0 : i32
    %c0_i32_1 = arith.constant 0 : i32
    return %c0_i32, %c0_i32_0 : i32, i32
  }
  func.func @transform_4(%arg0: i32) -> (i32, i32) {
    %c0_i32 = arith.constant 0 : i32
    %c0_i32_0 = arith.constant 0 : i32
    %c0_i32_1 = arith.constant 0 : i32
    return %c0_i32, %c0_i32_0 : i32, i32
  }
  func.func @transform_5(%arg0: i32) -> (i32, i32) {
    %c0_i32 = arith.constant 0 : i32
    %c0_i32_0 = arith.constant 0 : i32
    %c0_i32_1 = arith.constant 0 : i32
    return %c0_i32, %c0_i32_0 : i32, i32
  }
  func.func @transform_6(%arg0: i32) -> (i32, i32) {
    %c0_i32 = arith.constant 0 : i32
    %c0_i32_0 = arith.constant 0 : i32
    %c0_i32_1 = arith.constant 0 : i32
    return %c0_i32, %c0_i32_0 : i32, i32
  }
  func.func @transform_7(%arg0: i32) -> (i32, i32) {
    %c0_i32 = arith.constant 0 : i32
    %c0_i32_0 = arith.constant 0 : i32
    return %arg0, %c0_i32 : i32, i32
  }
}

</mosaic_0001>

<llo_original>
// kernel: _se_forward.1
$region0: #{_se_forward.1}
  #allocation0 [shape = 'u32[]', space=smem, size = 0x4, offset = 0x4, fixed_abs, tag = 'smem constant byte address 0x4 - core index']
  #allocation1 [shape = 'u32[72,128]{1,0:T(1,128)}', space=vmem, size = 0x9000, scoped, tag = 'internal scratch']
  #allocation2 [shape = 'f32[1,1]{1,0:T(1,128)S(1)}', space=vmem, size = 0x200, scoped, tag = 'scoped memory for _se_forward.1']
  %s0 = inlined_call_operand.vmem [shape: f32[2,1024], index: 0, kind: input, shape index: {}]
  %s1 = inlined_call_operand.vmem [shape: f32[1024,4], index: 1, kind: input, shape index: {}]
  %s2 = inlined_call_operand.vmem [shape: f32[4,1], index: 2, kind: input, shape index: {}]
  %s3 = inlined_call_operand.<no memory space> [shape: f32[1,1], index: 3, kind: input, shape index: {}]
  %s4 = inlined_call_operand.vmem [shape: f32[1,4], index: 4, kind: input, shape index: {}]
  %s5 = inlined_call_operand.vmem [shape: f32[1,4], index: 5, kind: input, shape index: {}]
  %s6 = inlined_call_operand.vmem [shape: f32[4,1024], index: 6, kind: input, shape index: {}]
  %s7 = inlined_call_operand.vmem [shape: f32[2,1024], index: 7, kind: output, shape index: {}]
  %s8 = sld [smem:[#allocation0]]
  $region38: #{_se_forward.1} parent=0
    _
  %s10 = ssub.s32 1, %s8
  %s11 = scalar_select 0, %s10, %s8
  %v12 = vstv %s3
  %13 = vst [vmem:[#allocation2] sm:$0x1] %v12
  // Predicated region
  $region2: #{_se_forward.1} parent=0 // pred_check
    _
  $region3: #{_se_forward.1} parent=0 // pred_check_branch
    %15 = sbr.rel (0) target = $region5
  $region4: #{_se_forward.1} parent=0 // pred_region
    _
  $region5: #{_se_forward.1} parent=0 // pred_fallthru
    _
  // Predicated region
  $region6: #{_se_forward.1} parent=0 // pred_check
    _
  $region7: #{_se_forward.1} parent=0 // pred_check_branch
    %17 = sbr.rel (0) target = $region9
  $region8: #{_se_forward.1} parent=0 // pred_region
    _
  $region9: #{_se_forward.1} parent=0 // pred_fallthru
    _
  // Predicated region
  $region10: #{_se_forward.1} parent=0 // pred_check
    _
  $region11: #{_se_forward.1} parent=0 // pred_check_branch
    %19 = sbr.rel (0) target = $region13
  $region12: #{_se_forward.1} parent=0 // pred_region
    _
  $region13: #{_se_forward.1} parent=0 // pred_fallthru
    _
  // Predicated region
  $region14: #{_se_forward.1} parent=0 // pred_check
    _
  $region15: #{_se_forward.1} parent=0 // pred_check_branch
    %21 = sbr.rel (0) target = $region17
  $region16: #{_se_forward.1} parent=0 // pred_region
    _
  $region17: #{_se_forward.1} parent=0 // pred_fallthru
    _
  // Predicated region
  $region18: #{_se_forward.1} parent=0 // pred_check
    _
  $region19: #{_se_forward.1} parent=0 // pred_check_branch
    %23 = sbr.rel (0) target = $region21
  $region20: #{_se_forward.1} parent=0 // pred_region
    _
  $region21: #{_se_forward.1} parent=0 // pred_fallthru
    _
  // Predicated region
  $region22: #{_se_forward.1} parent=0 // pred_check
    _
  $region23: #{_se_forward.1} parent=0 // pred_check_branch
    %25 = sbr.rel (0) target = $region25
  $region24: #{_se_forward.1} parent=0 // pred_region
    _
  $region25: #{_se_forward.1} parent=0 // pred_fallthru
    _
  // Predicated region
  $region26: #{_se_forward.1} parent=0 // pred_check
    _
  $region27: #{_se_forward.1} parent=0 // pred_check_branch
    %27 = sbr.rel (0) target = $region29
  $region28: #{_se_forward.1} parent=0 // pred_region
    _
  $region29: #{_se_forward.1} parent=0 // pred_fallthru
    _
  %v28 = vld [vmem:[%s0] sm:$0xff]
  %v29 = vld [vmem:[%s0 + $0x8] sm:$0xff]
  %v30 = vld [vmem:[%s1] sm:$0xff]
  %v31 = vld [vmem:[%s1 + $0x8] sm:$0xff]
  %v32 = vld [vmem:[%s1 + $0x10] sm:$0xff]
  %v33 = vld [vmem:[%s1 + $0x18] sm:$0xff]
  %v34 = vld [vmem:[%s1 + $0x20] sm:$0xff]
  %v35 = vld [vmem:[%s1 + $0x28] sm:$0xff]
  %v36 = vld [vmem:[%s1 + $0x30] sm:$0xff]
  %v37 = vld [vmem:[%s1 + $0x38] sm:$0xff]
  %v38 = vld [vmem:[%s1 + $0x40] sm:$0xff]
  %v39 = vld [vmem:[%s1 + $0x48] sm:$0xff]
  %v40 = vld [vmem:[%s1 + $0x50] sm:$0xff]
  %v41 = vld [vmem:[%s1 + $0x58] sm:$0xff]
  %v42 = vld [vmem:[%s1 + $0x60] sm:$0xff]
  %v43 = vld [vmem:[%s1 + $0x68] sm:$0xff]
  %v44 = vld [vmem:[%s1 + $0x70] sm:$0xff]
  %v45 = vld [vmem:[%s1 + $0x78] sm:$0xff]
  %v46 = vld [vmem:[%s1 + $0x80] sm:$0xff]
  %v47 = vld [vmem:[%s1 + $0x88] sm:$0xff]
  %v48 = vld [vmem:[%s1 + $0x90] sm:$0xff]
  %v49 = vld [vmem:[%s1 + $0x98] sm:$0xff]
  %v50 = vld [vmem:[%s1 + $0xa0] sm:$0xff]
  %v51 = vld [vmem:[%s1 + $0xa8] sm:$0xff]
  %v52 = vld [vmem:[%s1 + $0xb0] sm:$0xff]
  %v53 = vld [vmem:[%s1 + $0xb8] sm:$0xff]
  %v54 = vld [vmem:[%s1 + $0xc0] sm:$0xff]
  %v55 = vld [vmem:[%s1 + $0xc8] sm:$0xff]
  %v56 = vld [vmem:[%s1 + $0xd0] sm:$0xff]
  %v57 = vld [vmem:[%s1 + $0xd8] sm:$0xff]
  %v58 = vld [vmem:[%s1 + $0xe0] sm:$0xff]
  %v59 = vld [vmem:[%s1 + $0xe8] sm:$0xff]
  %v60 = vld [vmem:[%s1 + $0xf0] sm:$0xff]
  %v61 = vld [vmem:[%s1 + $0xf8] sm:$0xff]
  %v62 = vld [vmem:[%s1 + $0x100] sm:$0xff]
  %v63 = vld [vmem:[%s1 + $0x108] sm:$0xff]
  %v64 = vld [vmem:[%s1 + $0x110] sm:$0xff]
  %v65 = vld [vmem:[%s1 + $0x118] sm:$0xff]
  %v66 = vld [vmem:[%s1 + $0x120] sm:$0xff]
  %v67 = vld [vmem:[%s1 + $0x128] sm:$0xff]
  %v68 = vld [vmem:[%s1 + $0x130] sm:$0xff]
  %v69 = vld [vmem:[%s1 + $0x138] sm:$0xff]
  %v70 = vld [vmem:[%s1 + $0x140] sm:$0xff]
  %v71 = vld [vmem:[%s1 + $0x148] sm:$0xff]
  %v72 = vld [vmem:[%s1 + $0x150] sm:$0xff]
  %v73 = vld [vmem:[%s1 + $0x158] sm:$0xff]
  %v74 = vld [vmem:[%s1 + $0x160] sm:$0xff]
  %v75 = vld [vmem:[%s1 + $0x168] sm:$0xff]
  %v76 = vld [vmem:[%s1 + $0x170] sm:$0xff]
  %v77 = vld [vmem:[%s1 + $0x178] sm:$0xff]
  %v78 = vld [vmem:[%s1 + $0x180] sm:$0xff]
  %v79 = vld [vmem:[%s1 + $0x188] sm:$0xff]
  %v80 = vld [vmem:[%s1 + $0x190] sm:$0xff]
  %v81 = vld [vmem:[%s1 + $0x198] sm:$0xff]
  %v82 = vld [vmem:[%s1 + $0x1a0] sm:$0xff]
  %v83 = vld [vmem:[%s1 + $0x1a8] sm:$0xff]
  %v84 = vld [vmem:[%s1 + $0x1b0] sm:$0xff]
  %v85 = vld [vmem:[%s1 + $0x1b8] sm:$0xff]
  %v86 = vld [vmem:[%s1 + $0x1c0] sm:$0xff]
  %v87 = vld [vmem:[%s1 + $0x1c8] sm:$0xff]
  %v88 = vld [vmem:[%s1 + $0x1d0] sm:$0xff]
  %v89 = vld [vmem:[%s1 + $0x1d8] sm:$0xff]
  %v90 = vld [vmem:[%s1 + $0x1e0] sm:$0xff]
  %v91 = vld [vmem:[%s1 + $0x1e8] sm:$0xff]
  %v92 = vld [vmem:[%s1 + $0x1f0] sm:$0xff]
  %v93 = vld [vmem:[%s1 + $0x1f8] sm:$0xff]
  %v94 = vld [vmem:[%s1 + $0x200] sm:$0xff]
  %v95 = vld [vmem:[%s1 + $0x208] sm:$0xff]
  %v96 = vld [vmem:[%s1 + $0x210] sm:$0xff]
  %v97 = vld [vmem:[%s1 + $0x218] sm:$0xff]
  %v98 = vld [vmem:[%s1 + $0x220] sm:$0xff]
  %v99 = vld [vmem:[%s1 + $0x228] sm:$0xff]
  %v100 = vld [vmem:[%s1 + $0x230] sm:$0xff]
  %v101 = vld [vmem:[%s1 + $0x238] sm:$0xff]
  %v102 = vld [vmem:[%s1 + $0x240] sm:$0xff]
  %v103 = vld [vmem:[%s1 + $0x248] sm:$0xff]
  %v104 = vld [vmem:[%s1 + $0x250] sm:$0xff]
  %v105 = vld [vmem:[%s1 + $0x258] sm:$0xff]
  %v106 = vld [vmem:[%s1 + $0x260] sm:$0xff]
  %v107 = vld [vmem:[%s1 + $0x268] sm:$0xff]
  %v108 = vld [vmem:[%s1 + $0x270] sm:$0xff]
  %v109 = vld [vmem:[%s1 + $0x278] sm:$0xff]
  %v110 = vld [vmem:[%s1 + $0x280] sm:$0xff]
  %v111 = vld [vmem:[%s1 + $0x288] sm:$0xff]
  %v112 = vld [vmem:[%s1 + $0x290] sm:$0xff]
  %v113 = vld [vmem:[%s1 + $0x298] sm:$0xff]
  %v114 = vld [vmem:[%s1 + $0x2a0] sm:$0xff]
  %v115 = vld [vmem:[%s1 + $0x2a8] sm:$0xff]
  %v116 = vld [vmem:[%s1 + $0x2b0] sm:$0xff]
  %v117 = vld [vmem:[%s1 + $0x2b8] sm:$0xff]
  %v118 = vld [vmem:[%s1 + $0x2c0] sm:$0xff]
  %v119 = vld [vmem:[%s1 + $0x2c8] sm:$0xff]
  %v120 = vld [vmem:[%s1 + $0x2d0] sm:$0xff]
  %v121 = vld [vmem:[%s1 + $0x2d8] sm:$0xff]
  %v122 = vld [vmem:[%s1 + $0x2e0] sm:$0xff]
  %v123 = vld [vmem:[%s1 + $0x2e8] sm:$0xff]
  %v124 = vld [vmem:[%s1 + $0x2f0] sm:$0xff]
  %v125 = vld [vmem:[%s1 + $0x2f8] sm:$0xff]
  %v126 = vld [vmem:[%s1 + $0x300] sm:$0xff]
  %v127 = vld [vmem:[%s1 + $0x308] sm:$0xff]
  %v128 = vld [vmem:[%s1 + $0x310] sm:$0xff]
  %v129 = vld [vmem:[%s1 + $0x318] sm:$0xff]
  %v130 = vld [vmem:[%s1 + $0x320] sm:$0xff]
  %v131 = vld [vmem:[%s1 + $0x328] sm:$0xff]
  %v132 = vld [vmem:[%s1 + $0x330] sm:$0xff]
  %v133 = vld [vmem:[%s1 + $0x338] sm:$0xff]
  %v134 = vld [vmem:[%s1 + $0x340] sm:$0xff]
  %v135 = vld [vmem:[%s1 + $0x348] sm:$0xff]
  %v136 = vld [vmem:[%s1 + $0x350] sm:$0xff]
  %v137 = vld [vmem:[%s1 + $0x358] sm:$0xff]
  %v138 = vld [vmem:[%s1 + $0x360] sm:$0xff]
  %v139 = vld [vmem:[%s1 + $0x368] sm:$0xff]
  %v140 = vld [vmem:[%s1 + $0x370] sm:$0xff]
  %v141 = vld [vmem:[%s1 + $0x378] sm:$0xff]
  %v142 = vld [vmem:[%s1 + $0x380] sm:$0xff]
  %v143 = vld [vmem:[%s1 + $0x388] sm:$0xff]
  %v144 = vld [vmem:[%s1 + $0x390] sm:$0xff]
  %v145 = vld [vmem:[%s1 + $0x398] sm:$0xff]
  %v146 = vld [vmem:[%s1 + $0x3a0] sm:$0xff]
  %v147 = vld [vmem:[%s1 + $0x3a8] sm:$0xff]
  %v148 = vld [vmem:[%s1 + $0x3b0] sm:$0xff]
  %v149 = vld [vmem:[%s1 + $0x3b8] sm:$0xff]
  %v150 = vld [vmem:[%s1 + $0x3c0] sm:$0xff]
  %v151 = vld [vmem:[%s1 + $0x3c8] sm:$0xff]
  %v152 = vld [vmem:[%s1 + $0x3d0] sm:$0xff]
  %v153 = vld [vmem:[%s1 + $0x3d8] sm:$0xff]
  %v154 = vld [vmem:[%s1 + $0x3e0] sm:$0xff]
  %v155 = vld [vmem:[%s1 + $0x3e8] sm:$0xff]
  %v156 = vld [vmem:[%s1 + $0x3f0] sm:$0xff]
  %v157 = vld [vmem:[%s1 + $0x3f8] sm:$0xff]
  %160 = vst [vmem:[#allocation1] ss:$4 sm:$0xff] %v28
  %s161 = scalar_lea.vmem [#allocation1], 32
  %162 = vst [vmem:[%s161] ss:$4 sm:$0xff] %v29
  %v163 = vld.sshfl [vmem:[#allocation1] sm:$0xff pattern:$0x73625140]
  %v164 = vld.sshfl [vmem:[#allocation1 + $0x8] sm:$0xff pattern:$0x73625140]
  %v165 = vld.sshfl [vmem:[#allocation1 + $0x10] sm:$0xff pattern:$0x73625140]
  %v166 = vld.sshfl [vmem:[#allocation1 + $0x18] sm:$0xff pattern:$0x73625140]
  %v167 = vld.sshfl [vmem:[#allocation1 + $0x20] sm:$0xff pattern:$0x73625140]
  %v168 = vld.sshfl [vmem:[#allocation1 + $0x28] sm:$0xff pattern:$0x73625140]
  %v169 = vld.sshfl [vmem:[#allocation1 + $0x30] sm:$0xff pattern:$0x73625140]
  %v170 = vld.sshfl [vmem:[#allocation1 + $0x38] sm:$0xff pattern:$0x73625140]
  %179 = vmatpush.msra.mxu0 %v45
  %180 = vmatpush.msra.mxu0 %v44
  %181 = vmatpush.msra.mxu0 %v43
  %182 = vmatpush.msra.mxu0 %v42
  %183 = vmatpush.msra.mxu0 %v41
  %184 = vmatpush.msra.mxu0 %v40
  %185 = vmatpush.msra.mxu0 %v39
  %186 = vmatpush.msra.mxu0 %v38
  %187 = vmatpush.msra.mxu0 %v37
  %188 = vmatpush.msra.mxu0 %v36
  %189 = vmatpush.msra.mxu0 %v35
  %190 = vmatpush.msra.mxu0 %v34
  %191 = vmatpush.msra.mxu0 %v33
  %192 = vmatpush.msra.mxu0 %v32
  %193 = vmatpush.msra.mxu0 %v31
  %194 = vmatpush.msra.mxu0 %v30
  %195 = vmatmul.f32.gmra.mxu0 %v163
  %v196 = vpop.f32.mrf.mxu0
  %v197 = vadd.f32 0.0, %v196
  %198 = vdwg.mxu0
  %199 = vmatpush.msra.mxu0 %v61
  %200 = vmatpush.msra.mxu0 %v60
  %201 = vmatpush.msra.mxu0 %v59
  %202 = vmatpush.msra.mxu0 %v58
  %203 = vmatpush.msra.mxu0 %v57
  %204 = vmatpush.msra.mxu0 %v56
  %205 = vmatpush.msra.mxu0 %v55
  %206 = vmatpush.msra.mxu0 %v54
  %207 = vmatpush.msra.mxu0 %v53
  %208 = vmatpush.msra.mxu0 %v52
  %209 = vmatpush.msra.mxu0 %v51
  %210 = vmatpush.msra.mxu0 %v50
  %211 = vmatpush.msra.mxu0 %v49
  %212 = vmatpush.msra.mxu0 %v48
  %213 = vmatpush.msra.mxu0 %v47
  %214 = vmatpush.msra.mxu0 %v46
  %215 = vmatmul.f32.gmra.mxu0 %v164
  %v216 = vpop.f32.mrf.mxu0
  %v217 = vadd.f32 %v197, %v216
  %218 = vdwg.mxu0
  %219 = vmatpush.msra.mxu0 %v77
  %220 = vmatpush.msra.mxu0 %v76
  %221 = vmatpush.msra.mxu0 %v75
  %222 = vmatpush.msra.mxu0 %v74
  %223 = vmatpush.msra.mxu0 %v73
  %224 = vmatpush.msra.mxu0 %v72
  %225 = vmatpush.msra.mxu0 %v71
  %226 = vmatpush.msra.mxu0 %v70
  %227 = vmatpush.msra.mxu0 %v69
  %228 = vmatpush.msra.mxu0 %v68
  %229 = vmatpush.msra.mxu0 %v67
  %230 = vmatpush.msra.mxu0 %v66
  %231 = vmatpush.msra.mxu0 %v65
  %232 = vmatpush.msra.mxu0 %v64
  %233 = vmatpush.msra.mxu0 %v63
  %234 = vmatpush.msra.mxu0 %v62
  %235 = vmatmul.f32.gmra.mxu0 %v165
  %v236 = vpop.f32.mrf.mxu0
  %v237 = vadd.f32 %v217, %v236
  %238 = vdwg.mxu0
  %239 = vmatpush.msra.mxu0 %v93
  %240 = vmatpush.msra.mxu0 %v92
  %241 = vmatpush.msra.mxu0 %v91
  %242 = vmatpush.msra.mxu0 %v90
  %243 = vmatpush.msra.mxu0 %v89
  %244 = vmatpush.msra.mxu0 %v88
  %245 = vmatpush.msra.mxu0 %v87
  %246 = vmatpush.msra.mxu0 %v86
  %247 = vmatpush.msra.mxu0 %v85
  %248 = vmatpush.msra.mxu0 %v84
  %249 = vmatpush.msra.mxu0 %v83
  %250 = vmatpush.msra.mxu0 %v82
  %251 = vmatpush.msra.mxu0 %v81
  %252 = vmatpush.msra.mxu0 %v80
  %253 = vmatpush.msra.mxu0 %v79
  %254 = vmatpush.msra.mxu0 %v78
  %255 = vmatmul.f32.gmra.mxu0 %v166
  %v256 = vpop.f32.mrf.mxu0
  %v257 = vadd.f32 %v237, %v256
  %258 = vdwg.mxu0
  %259 = vmatpush.msra.mxu0 %v109
  %260 = vmatpush.msra.mxu0 %v108
  %261 = vmatpush.msra.mxu0 %v107
  %262 = vmatpush.msra.mxu0 %v106
  %263 = vmatpush.msra.mxu0 %v105
  %264 = vmatpush.msra.mxu0 %v104
  %265 = vmatpush.msra.mxu0 %v103
  %266 = vmatpush.msra.mxu0 %v102
  %267 = vmatpush.msra.mxu0 %v101
  %268 = vmatpush.msra.mxu0 %v100
  %269 = vmatpush.msra.mxu0 %v99
  %270 = vmatpush.msra.mxu0 %v98
  %271 = vmatpush.msra.mxu0 %v97
  %272 = vmatpush.msra.mxu0 %v96
  %273 = vmatpush.msra.mxu0 %v95
  %274 = vmatpush.msra.mxu0 %v94
  %275 = vmatmul.f32.gmra.mxu0 %v167
  %v276 = vpop.f32.mrf.mxu0
  %v277 = vadd.f32 %v257, %v276
  %278 = vdwg.mxu0
  %279 = vmatpush.msra.mxu0 %v125
  %280 = vmatpush.msra.mxu0 %v124
  %281 = vmatpush.msra.mxu0 %v123
  %282 = vmatpush.msra.mxu0 %v122
  %283 = vmatpush.msra.mxu0 %v121
  %284 = vmatpush.msra.mxu0 %v120
  %285 = vmatpush.msra.mxu0 %v119
  %286 = vmatpush.msra.mxu0 %v118
  %287 = vmatpush.msra.mxu0 %v117
  %288 = vmatpush.msra.mxu0 %v116
  %289 = vmatpush.msra.mxu0 %v115
  %290 = vmatpush.msra.mxu0 %v114
  %291 = vmatpush.msra.mxu0 %v113
  %292 = vmatpush.msra.mxu0 %v112
  %293 = vmatpush.msra.mxu0 %v111
  %294 = vmatpush.msra.mxu0 %v110
  %295 = vmatmul.f32.gmra.mxu0 %v168
  %v296 = vpop.f32.mrf.mxu0
  %v297 = vadd.f32 %v277, %v296
  %298 = vdwg.mxu0
  %299 = vmatpush.msra.mxu0 %v141
  %300 = vmatpush.msra.mxu0 %v140
  %301 = vmatpush.msra.mxu0 %v139
  %302 = vmatpush.msra.mxu0 %v138
  %303 = vmatpush.msra.mxu0 %v137
  %304 = vmatpush.msra.mxu0 %v136
  %305 = vmatpush.msra.mxu0 %v135
  %306 = vmatpush.msra.mxu0 %v134
  %307 = vmatpush.msra.mxu0 %v133
  %308 = vmatpush.msra.mxu0 %v132
  %309 = vmatpush.msra.mxu0 %v131
  %310 = vmatpush.msra.mxu0 %v130
  %311 = vmatpush.msra.mxu0 %v129
  %312 = vmatpush.msra.mxu0 %v128
  %313 = vmatpush.msra.mxu0 %v127
  %314 = vmatpush.msra.mxu0 %v126
  %315 = vmatmul.f32.gmra.mxu0 %v169
  %v316 = vpop.f32.mrf.mxu0
  %v317 = vadd.f32 %v297, %v316
  %318 = vdwg.mxu0
  %319 = vmatpush.msra.mxu0 %v157
  %320 = vmatpush.msra.mxu0 %v156
  %321 = vmatpush.msra.mxu0 %v155
  %322 = vmatpush.msra.mxu0 %v154
  %323 = vmatpush.msra.mxu0 %v153
  %324 = vmatpush.msra.mxu0 %v152
  %325 = vmatpush.msra.mxu0 %v151
  %326 = vmatpush.msra.mxu0 %v150
  %327 = vmatpush.msra.mxu0 %v149
  %328 = vmatpush.msra.mxu0 %v148
  %329 = vmatpush.msra.mxu0 %v147
  %330 = vmatpush.msra.mxu0 %v146
  %331 = vmatpush.msra.mxu0 %v145
  %332 = vmatpush.msra.mxu0 %v144
  %333 = vmatpush.msra.mxu0 %v143
  %334 = vmatpush.msra.mxu0 %v142
  %335 = vmatmul.f32.gmra.mxu0 %v170
  %v336 = vpop.f32.mrf.mxu0
  %v337 = vadd.f32 %v317, %v336
  %338 = vdwg.mxu0
  %v339 = vld [vmem:[%s2] sm:$0xf]
  %v340 = vld [vmem:[#allocation2] sm:$0x1]
  %v342 = vperm.slane %v340, 0
  %vm344 = vcmask 31744
  %v346 = vsel %vm344, %v337, 0
  %vm348 = vcmask 1043456
  %v350 = vsel %vm348, %v339, 0
  %352 = vmatpush.msra.mxu0 0.0
  %353 = vmatpush.msra.mxu0 0.0
  %354 = vmatpush.msra.mxu0 0.0
  %355 = vmatpush.msra.mxu0 0.0
  %356 = vmatpush.msra.mxu0 0.0
  %357 = vmatpush.msra.mxu0 0.0
  %358 = vmatpush.msra.mxu0 0.0
  %359 = vmatpush.msra.mxu0 0.0
  %360 = vmatpush.msra.mxu0 0.0
  %361 = vmatpush.msra.mxu0 0.0
  %362 = vmatpush.msra.mxu0 0.0
  %363 = vmatpush.msra.mxu0 0.0
  %364 = vmatpush.msra.mxu0 0.0
  %365 = vmatpush.msra.mxu0 0.0
  %366 = vmatpush.msra.mxu0 0.0
  %367 = vmatpush.msra.mxu0 %v350
  %368 = vmatmul.f32.gmra.mxu0 %v346
  %v369 = vpop.f32.mrf.mxu0
  %v370 = vadd.f32 %v342, %v369
  %371 = vdwg.mxu0
  %v372 = vmax.f32 %v370, 0.0
  %v373 = vld [vmem:[%s4] sm:$0x1]
  %v374 = vld [vmem:[%s5] sm:$0x1]
  %v376 = vperm.slane %v374, 0
  %vm378 = vcmask 7168
  %v380 = vsel %vm378, %v372, 0
  %vm382 = vcmask 1040384
  %v384 = vsel %vm382, %v373, 0
  %386 = vmatpush.msra.mxu0 0.0
  %387 = vmatpush.msra.mxu0 0.0
  %388 = vmatpush.msra.mxu0 0.0
  %389 = vmatpush.msra.mxu0 0.0
  %390 = vmatpush.msra.mxu0 0.0
  %391 = vmatpush.msra.mxu0 0.0
  %392 = vmatpush.msra.mxu0 0.0
  %393 = vmatpush.msra.mxu0 0.0
  %394 = vmatpush.msra.mxu0 0.0
  %395 = vmatpush.msra.mxu0 0.0
  %396 = vmatpush.msra.mxu0 0.0
  %397 = vmatpush.msra.mxu0 0.0
  %398 = vmatpush.msra.mxu0 0.0
  %399 = vmatpush.msra.mxu0 0.0
  %400 = vmatpush.msra.mxu0 0.0
  %401 = vmatpush.msra.mxu0 %v384
  %402 = vmatmul.f32.gmra.mxu0 %v380
  %v403 = vpop.f32.mrf.mxu0
  %v404 = vadd.f32 %v376, %v403
  %405 = vdwg.mxu0
  %v406 = vxor.u32 %v404, 2147483648
  %v407 = vmul.f32 %v406, 1.442695
  %v408 = vpow.pop %v407
  %v409 = vadd.f32 %v408, 1.0
  %v410 = vrcp.pop %v409
  %v411 = vmul.f32 %v409, %v410
  %v412 = vsub.f32 1.0, %v411
  %v413 = vmul.f32 %v410, %v412
  %v414 = vadd.f32 %v410, %v413
  %vm415 = vweird.f32 %v409
  %vm416 = vweird.f32 %v410
  %vm417 = vmor %vm415, %vm416
  %v418 = vsel %vm417, %v410, %v414
  %v419 = vand.u32 2147483647, %v409
  %vm420 = vcmp.eq.f32.partialorder %v419, 8.507059e+37
  %v421 = vand.u32 %v409, 2147483648
  %v422 = vor.u32 1.1754944e-38, %v421
  %v423 = vsel %vm420, %v422, %v418
  %v424 = vmul.f32 1.0, %v423
  %v425 = vld [vmem:[%s6] sm:$0xff]
  %v426 = vld [vmem:[%s6 + $0x8] sm:$0xff]
  %v427 = vld [vmem:[%s6 + $0x10] sm:$0xff]
  %v428 = vld [vmem:[%s6 + $0x18] sm:$0xff]
  %433 = vst [vmem:[#allocation1] ss:$2 sm:$0xff] %v425
  %s434 = scalar_lea.vmem [#allocation1], 16
  %435 = vst [vmem:[%s434] ss:$2 sm:$0xff] %v426
  %s436 = scalar_lea.vmem [#allocation1], 32
  %437 = vst [vmem:[%s436] ss:$2 sm:$0xff] %v427
  %s438 = scalar_lea.vmem [#allocation1], 48
  %439 = vst [vmem:[%s438] ss:$2 sm:$0xff] %v428
  %v440 = vld.sshfl [vmem:[#allocation1] sm:$0xff pattern:$0x75316420]
  %v441 = vld.sshfl [vmem:[#allocation1 + $0x8] sm:$0xff pattern:$0x75316420]
  %v442 = vld.sshfl [vmem:[#allocation1 + $0x10] sm:$0xff pattern:$0x75316420]
  %v443 = vld.sshfl [vmem:[#allocation1 + $0x18] sm:$0xff pattern:$0x75316420]
  %v444 = vld.sshfl [vmem:[#allocation1 + $0x20] sm:$0xff pattern:$0x75316420]
  %v445 = vld.sshfl [vmem:[#allocation1 + $0x28] sm:$0xff pattern:$0x75316420]
  %v446 = vld.sshfl [vmem:[#allocation1 + $0x30] sm:$0xff pattern:$0x75316420]
  %v447 = vld.sshfl [vmem:[#allocation1 + $0x38] sm:$0xff pattern:$0x75316420]
  %v449 = vsel %vm344, %v424, 0
  %v451 = vsel %vm348, %v440, 0
  %v453 = vsel %vm348, %v441, 0
  %v455 = vsel %vm348, %v442, 0
  %v457 = vsel %vm348, %v443, 0
  %v459 = vsel %vm348, %v444, 0
  %v461 = vsel %vm348, %v445, 0
  %v463 = vsel %vm348, %v446, 0
  %v465 = vsel %vm348, %v447, 0
  %467 = vmatpush.msra.mxu0 0.0
  %468 = vmatpush.msra.mxu0 0.0
  %469 = vmatpush.msra.mxu0 0.0
  %470 = vmatpush.msra.mxu0 0.0
  %471 = vmatpush.msra.mxu0 0.0
  %472 = vmatpush.msra.mxu0 0.0
  %473 = vmatpush.msra.mxu0 0.0
  %474 = vmatpush.msra.mxu0 0.0
  %475 = vmatpush.msra.mxu0 0.0
  %476 = vmatpush.msra.mxu0 0.0
  %477 = vmatpush.msra.mxu0 0.0
  %478 = vmatpush.msra.mxu0 0.0
  %479 = vmatpush.msra.mxu0 0.0
  %480 = vmatpush.msra.mxu0 0.0
  %481 = vmatpush.msra.mxu0 0.0
  %482 = vmatpush.msra.mxu0 %v451
  %483 = vmatmul.f32.gmra.mxu0 %v449
  %v484 = vpop.f32.mrf.mxu0
  %v485 = vadd.f32 0.0, %v484
  %486 = vdwg.mxu0
  %487 = vmatpush.msra.mxu0 0.0
  %488 = vmatpush.msra.mxu0 0.0
  %489 = vmatpush.msra.mxu0 0.0
  %490 = vmatpush.msra.mxu0 0.0
  %491 = vmatpush.msra.mxu0 0.0
  %492 = vmatpush.msra.mxu0 0.0
  %493 = vmatpush.msra.mxu0 0.0
  %494 = vmatpush.msra.mxu0 0.0
  %495 = vmatpush.msra.mxu0 0.0
  %496 = vmatpush.msra.mxu0 0.0
  %497 = vmatpush.msra.mxu0 0.0
  %498 = vmatpush.msra.mxu0 0.0
  %499 = vmatpush.msra.mxu0 0.0
  %500 = vmatpush.msra.mxu0 0.0
  %501 = vmatpush.msra.mxu0 0.0
  %502 = vmatpush.msra.mxu0 %v453
  %503 = vmatmul.f32.gmra.mxu0 %v449
  %v504 = vpop.f32.mrf.mxu0
  %v505 = vadd.f32 0.0, %v504
  %506 = vdwg.mxu0
  %507 = vmatpush.msra.mxu0 0.0
  %508 = vmatpush.msra.mxu0 0.0
  %509 = vmatpush.msra.mxu0 0.0
  %510 = vmatpush.msra.mxu0 0.0
  %511 = vmatpush.msra.mxu0 0.0
  %512 = vmatpush.msra.mxu0 0.0
  %513 = vmatpush.msra.mxu0 0.0
  %514 = vmatpush.msra.mxu0 0.0
  %515 = vmatpush.msra.mxu0 0.0
  %516 = vmatpush.msra.mxu0 0.0
  %517 = vmatpush.msra.mxu0 0.0
  %518 = vmatpush.msra.mxu0 0.0
  %519 = vmatpush.msra.mxu0 0.0
  %520 = vmatpush.msra.mxu0 0.0
  %521 = vmatpush.msra.mxu0 0.0
  %522 = vmatpush.msra.mxu0 %v455
  %523 = vmatmul.f32.gmra.mxu0 %v449
  %v524 = vpop.f32.mrf.mxu0
  %v525 = vadd.f32 0.0, %v524
  %526 = vdwg.mxu0
  %527 = vmatpush.msra.mxu0 0.0
  %528 = vmatpush.msra.mxu0 0.0
  %529 = vmatpush.msra.mxu0 0.0
  %530 = vmatpush.msra.mxu0 0.0
  %531 = vmatpush.msra.mxu0 0.0
  %532 = vmatpush.msra.mxu0 0.0
  %533 = vmatpush.msra.mxu0 0.0
  %534 = vmatpush.msra.mxu0 0.0
  %535 = vmatpush.msra.mxu0 0.0
  %536 = vmatpush.msra.mxu0 0.0
  %537 = vmatpush.msra.mxu0 0.0
  %538 = vmatpush.msra.mxu0 0.0
  %539 = vmatpush.msra.mxu0 0.0
  %540 = vmatpush.msra.mxu0 0.0
  %541 = vmatpush.msra.mxu0 0.0
  %542 = vmatpush.msra.mxu0 %v457
  %543 = vmatmul.f32.gmra.mxu0 %v449
  %v544 = vpop.f32.mrf.mxu0
  %v545 = vadd.f32 0.0, %v544
  %546 = vdwg.mxu0
  %547 = vmatpush.msra.mxu0 0.0
  %548 = vmatpush.msra.mxu0 0.0
  %549 = vmatpush.msra.mxu0 0.0
  %550 = vmatpush.msra.mxu0 0.0
  %551 = vmatpush.msra.mxu0 0.0
  %552 = vmatpush.msra.mxu0 0.0
  %553 = vmatpush.msra.mxu0 0.0
  %554 = vmatpush.msra.mxu0 0.0
  %555 = vmatpush.msra.mxu0 0.0
  %556 = vmatpush.msra.mxu0 0.0
  %557 = vmatpush.msra.mxu0 0.0
  %558 = vmatpush.msra.mxu0 0.0
  %559 = vmatpush.msra.mxu0 0.0
  %560 = vmatpush.msra.mxu0 0.0
  %561 = vmatpush.msra.mxu0 0.0
  %562 = vmatpush.msra.mxu0 %v459
  %563 = vmatmul.f32.gmra.mxu0 %v449
  %v564 = vpop.f32.mrf.mxu0
  %v565 = vadd.f32 0.0, %v564
  %566 = vdwg.mxu0
  %567 = vmatpush.msra.mxu0 0.0
  %568 = vmatpush.msra.mxu0 0.0
  %569 = vmatpush.msra.mxu0 0.0
  %570 = vmatpush.msra.mxu0 0.0
  %571 = vmatpush.msra.mxu0 0.0
  %572 = vmatpush.msra.mxu0 0.0
  %573 = vmatpush.msra.mxu0 0.0
  %574 = vmatpush.msra.mxu0 0.0
  %575 = vmatpush.msra.mxu0 0.0
  %576 = vmatpush.msra.mxu0 0.0
  %577 = vmatpush.msra.mxu0 0.0
  %578 = vmatpush.msra.mxu0 0.0
  %579 = vmatpush.msra.mxu0 0.0
  %580 = vmatpush.msra.mxu0 0.0
  %581 = vmatpush.msra.mxu0 0.0
  %582 = vmatpush.msra.mxu0 %v461
  %583 = vmatmul.f32.gmra.mxu0 %v449
  %v584 = vpop.f32.mrf.mxu0
  %v585 = vadd.f32 0.0, %v584
  %586 = vdwg.mxu0
  %587 = vmatpush.msra.mxu0 0.0
  %588 = vmatpush.msra.mxu0 0.0
  %589 = vmatpush.msra.mxu0 0.0
  %590 = vmatpush.msra.mxu0 0.0
  %591 = vmatpush.msra.mxu0 0.0
  %592 = vmatpush.msra.mxu0 0.0
  %593 = vmatpush.msra.mxu0 0.0
  %594 = vmatpush.msra.mxu0 0.0
  %595 = vmatpush.msra.mxu0 0.0
  %596 = vmatpush.msra.mxu0 0.0
  %597 = vmatpush.msra.mxu0 0.0
  %598 = vmatpush.msra.mxu0 0.0
  %599 = vmatpush.msra.mxu0 0.0
  %600 = vmatpush.msra.mxu0 0.0
  %601 = vmatpush.msra.mxu0 0.0
  %602 = vmatpush.msra.mxu0 %v463
  %603 = vmatmul.f32.gmra.mxu0 %v449
  %v604 = vpop.f32.mrf.mxu0
  %v605 = vadd.f32 0.0, %v604
  %606 = vdwg.mxu0
  %607 = vmatpush.msra.mxu0 0.0
  %608 = vmatpush.msra.mxu0 0.0
  %609 = vmatpush.msra.mxu0 0.0
  %610 = vmatpush.msra.mxu0 0.0
  %611 = vmatpush.msra.mxu0 0.0
  %612 = vmatpush.msra.mxu0 0.0
  %613 = vmatpush.msra.mxu0 0.0
  %614 = vmatpush.msra.mxu0 0.0
  %615 = vmatpush.msra.mxu0 0.0
  %616 = vmatpush.msra.mxu0 0.0
  %617 = vmatpush.msra.mxu0 0.0
  %618 = vmatpush.msra.mxu0 0.0
  %619 = vmatpush.msra.mxu0 0.0
  %620 = vmatpush.msra.mxu0 0.0
  %621 = vmatpush.msra.mxu0 0.0
  %622 = vmatpush.msra.mxu0 %v465
  %623 = vmatmul.f32.gmra.mxu0 %v449
  %v624 = vpop.f32.mrf.mxu0
  %v625 = vadd.f32 0.0, %v624
  %626 = vdwg.mxu0
  %v635 = vrot.slane %v505, 6
  %v636 = vrot.slane %v525, 4
  %v637 = vrot.slane %v545, 2
  %v638 = vrot.slane %v585, 6
  %v639 = vrot.slane %v605, 4
  %v640 = vrot.slane %v625, 2
  %vm641 = vcmask 1041408
  %v642 = vsel %vm641, %v485, %v635
  %vm643 = vcmask 1045508
  %v644 = vsel %vm643, %v636, %v637
  %v645 = vsel %vm348, %v642, %v644
  %v646 = vsel %vm641, %v565, %v638
  %v647 = vsel %vm643, %v639, %v640
  %v648 = vsel %vm348, %v646, %v647
  %v651 = vmul.f32 %v28, %v645
  %v652 = vmul.f32 %v29, %v648
  %653 = vst [vmem:[%s7] sm:$0xff] %v651
  %654 = vst [vmem:[%s7 + $0x8] sm:$0xff] %v652
  // Predicated region
  $region30: #{_se_forward.1} parent=0 // pred_check
    _
  $region31: #{_se_forward.1} parent=0 // pred_check_branch
    %656 = sbr.rel (0) target = $region33
  $region32: #{_se_forward.1} parent=0 // pred_region
    _
  $region33: #{_se_forward.1} parent=0 // pred_fallthru
    _
  // Predicated region
  $region34: #{_se_forward.1} parent=0 // pred_check
    _
  $region35: #{_se_forward.1} parent=0 // pred_check_branch
    %658 = sbr.rel (0) target = $region37
  $region36: #{_se_forward.1} parent=0 // pred_region
    _
  $region37: #{_se_forward.1} parent=0 // pred_fallthru
    _

</llo_original>
